<compile_context>
chip_gen: v7x
topology: tpu7x:2x2x1
jax: 0.10.0
libtpu: 0.0.40
codegen_flags: <defaults>
</compile_context>

<pallas_src>
import jax
import jax.numpy as jnp
from jax import lax
from jax.experimental import pallas as pl
from jax.experimental.pallas import tpu as pltpu

DECAY = 0.2     # global `decay` in models/SNN.py
THRESH = 0.3    # self.thresh
BETA = 0.07     # self.beta


# --------------------------- TPU generation info --------------------------- #

def _detect_tpu():
    """(pipelined VMEM budget, vmem_limit_bytes, tensorcores per chip)."""
    phys_vmem = 64 * 1024 * 1024          # conservative default (v7x)
    cores = 2                             # conservative: >=2 grid steps per TC
    try:
        info = pltpu.get_tpu_info()
        phys_vmem = int(getattr(info, "vmem_capacity_bytes", phys_vmem))
        for name in ("num_cores", "core_count", "tensorcores_per_chip",
                     "num_tensorcores"):
            v = getattr(info, name, None)
            if v:
                cores = int(v)
                break
    except Exception:
        pass
    if phys_vmem >= 100 * 1024 * 1024:    # v5e / v6e: 128 MiB physical VMEM
        return 56 * 1024 * 1024, 96 * 1024 * 1024, max(1, cores)
    return 24 * 1024 * 1024, 48 * 1024 * 1024, max(1, cores)   # v7x: 64 MiB


_VMEM_BUDGET, _VMEM_LIMIT, _N_CORES = _detect_tpu()


# ----------------------------- Pallas kernels ------------------------------ #

def _conv_taps(xb_ref, w_ref, bias_ref, th):
    """3x3 conv (pad=1, stride=1) fused with BN, as 3 banded MXU matmuls."""
    xb = xb_ref[...]                                           # (th+2, (W+2)*Cin)
    acc = jnp.dot(xb[0:th, :], w_ref[0], preferred_element_type=jnp.float32)
    acc = acc + jnp.dot(xb[1:th + 1, :], w_ref[1],
                        preferred_element_type=jnp.float32)
    acc = acc + jnp.dot(xb[2:th + 2, :], w_ref[2],
                        preferred_element_type=jnp.float32)
    return acc + bias_ref[...]                                 # (th, W*Cout)


def _conv_bn_kernel(xb_ref, w_ref, bias_ref, out_ref):
    """mixed_at_mem path: fused conv+BN only."""
    out_ref[...] = _conv_taps(xb_ref, w_ref, bias_ref, out_ref.shape[0])


def _lsnn_kernel(xb_ref, w_ref, bias_ref, alpha_ref, mem_ref, a_ref,
                 spike_ref, mem_out_ref, a_out_ref):
    """Fused conv+BN (MXU) + LSNN adaptive-threshold neuron update (VPU)."""
    th = mem_ref.shape[0]
    mem_this = _conv_taps(xb_ref, w_ref, bias_ref, th)
    a_prev = a_ref[...]
    v_th = THRESH + BETA * a_prev                     # adaptive threshold A
    mem = mem_ref[...] + mem_this                     # membrane integration
    spike = (mem > v_th).astype(jnp.float32)          # ActFun_lsnn.forward
    spike_ref[...] = spike.astype(spike_ref.dtype)    # bf16 {0,1} writeback
    mem_out_ref[...] = mem * DECAY * (1.0 - spike)    # leak + soft reset
    a_out_ref[...] = alpha_ref[...] * a_prev + spike  # exp(-1/rho)*a + s


# ------------------------------ helpers ------------------------------------ #

def _band_height(B, H, fin, fout):
    """Output rows per H-band: VMEM-safe, >= 2 grid steps per TensorCore."""
    # double-buffered bytes per output row: xb bf16 + mem/a in f32 +
    # spike bf16 + mem/a out f32; weight/bias/alpha are resident.
    per_row = 2 * (fin * 2 + fout * (4 + 4 + 2 + 4 + 4))
    weight_bytes = 2 * (3 * fin * fout * 2 + 2 * fout * 4)
    budget = max(_VMEM_BUDGET - weight_bytes, 256 * 1024)
    th_vmem = max(1, budget // per_row - 2)
    bands_needed = max(1, -(-2 * _N_CORES // B))      # ceil(2*cores / B)
    th_steps = max(1, H // bands_needed)
    th = max(1, min(H, th_vmem, th_steps))
    if th >= 8:
        th = (th // 8) * 8                            # sublane-friendly
    return int(th)


def prepare_params(w, b, bn_gamma, bn_beta, bn_mean, bn_var, rho, *, W,
                   bn_eps=1e-5, conv_dtype=jnp.bfloat16):
    """Fuse eval-mode BatchNorm into the conv and build the W-banded weight.

    Returns (w_band (3, (W+2)*Cin, W*Cout) conv_dtype,
             bias_row (1, W*Cout) f32, alpha_row (1, W*Cout) f32).
    Call once and reuse for every timestep.  Set conv_dtype=jnp.float32 for
    exact-threshold behaviour (slower MXU).
    """
    Cout, Cin, KH, KW = w.shape
    assert KH == 3 and KW == 3, "kernel supports the 3x3/stride1/pad1 config"

    # glue: fuse_conv_bn_eval
    scale = bn_gamma / jnp.sqrt(bn_var + bn_eps)
    w_fused = w * scale[:, None, None, None]                    # (Cout,Cin,3,3)
    b_fused = (b - bn_mean) * scale + bn_beta                   # (Cout,)

    # W-banded weight: out[t, w*Cout+co] = sum_dh xband[t+dh, :] @ w_band[dh]
    #   w_band[dh, p*Cin+ci, w*Cout+co] = w_fused[co, ci, dh, p-w] iff 0<=p-w<=2
    wk = jnp.transpose(w_fused, (2, 3, 1, 0))                   # (dh,dw,Cin,Cout)
    shift = jnp.stack([jnp.eye(W + 2, W, k=-dw, dtype=w.dtype)
                       for dw in range(3)])                     # (dw, W+2, W)
    w_band = jnp.einsum("dpw,hdio->hpiwo", shift, wk)           # (3,W+2,Cin,W,Cout)
    w_band = w_band.reshape(3, (W + 2) * Cin, W * Cout).astype(conv_dtype)

    bias_row = jnp.tile(b_fused, W).reshape(1, W * Cout).astype(jnp.float32)

    # rho.data.clamp_(0.64, 1.1) applied functionally (idempotent).
    rho_c = jnp.clip(rho.reshape(Cout), 0.64, 1.1)
    alpha_row = jnp.tile(jnp.exp(-1.0 / rho_c), W)
    alpha_row = alpha_row.reshape(1, W * Cout).astype(jnp.float32)
    return w_band, bias_row, alpha_row


def state_to_nchw(state, B, H, W, Cout):
    """Convert the opaque internal (mem, a) state to NCHW (test / rollout end)."""
    def cv(y):
        y = y.reshape(B, -1, W, Cout)[:, :H]
        return jnp.transpose(y, (0, 3, 1, 2))
    mem_g, a_g = state
    return cv(mem_g), cv(a_g)


# ------------------------------ wrapper ------------------------------------ #

def snn_2d_lsnn_step(x, w_band, bias_row, alpha_row, state=None, *,
                     mixed_at_mem=False, is_first=True,
                     spike_dtype=jnp.float32):
    """One SNN_2d_lsnn.forward timestep.

    x: (B, Cin, H, W) NCHW f32.  Returns:
      - mem_this (NCHW f32)                      if mixed_at_mem
      - (spike (NCHW, spike_dtype), new_state)   otherwise, where new_state
        keeps mem/a in the kernel's internal lane-dense layout -- pass it
        straight back in as `state` on the next timestep.
    """
    B, Cin, H, W = x.shape
    fin = (W + 2) * Cin
    fout = w_band.shape[2]
    Cout = fout // W
    assert w_band.shape == (3, fin, fout)

    conv_dtype = w_band.dtype
    th = _band_height(B, H, fin, fout)
    nH = -(-H // th)
    H_pad = nH * th
    NB = B * nH

    # ---- glue: NHWC + spatial zero pad (the only input copy; no 9x im2col) --
    x_nhwc = jnp.transpose(x, (0, 2, 3, 1)).astype(conv_dtype)      # (B,H,W,Cin)
    x_sp = jnp.pad(x_nhwc, ((0, 0), (1, 1 + H_pad - H), (1, 1), (0, 0)))
    # overlapping H-bands with a 1-row halo on each side
    xb = jnp.stack([x_sp[:, hb * th: hb * th + th + 2] for hb in range(nH)],
                   axis=1)                                # (B,nH,th+2,W+2,Cin)
    xb = xb.reshape(NB, th + 2, fin)

    in_band = pl.BlockSpec((None, th + 2, fin), lambda i: (i, 0, 0))
    in_w = pl.BlockSpec((3, fin, fout), lambda i: (0, 0, 0))   # fetched once
    in_vec = pl.BlockSpec((1, fout), lambda i: (0, 0))
    io_state = pl.BlockSpec((None, th, fout), lambda i: (i, 0, 0))

    cparams = pltpu.CompilerParams(
        dimension_semantics=("parallel",),
        vmem_limit_bytes=_VMEM_LIMIT)

    def to_nchw(y, dtype):
        y = y.reshape(B, H_pad, W, Cout)[:, :H]
        return jnp.transpose(y, (0, 3, 1, 2)).astype(dtype)

    if mixed_at_mem:
        mem_this = pl.pallas_call(
            _conv_bn_kernel,
            out_shape=jax.ShapeDtypeStruct((NB, th, fout), jnp.float32),
            grid_spec=pltpu.PrefetchScalarGridSpec(
                num_scalar_prefetch=0, grid=(NB,),
                in_specs=[in_band, in_w, in_vec],
                out_specs=io_state),
            compiler_params=cparams,
        )(xb, w_band, bias_row)
        return to_nchw(mem_this, jnp.float32)

    # ---- state handling (mirrors the PyTorch forward) ----
    if is_first or state is None:
        mem_g = jnp.zeros((NB, th, fout), jnp.float32)
        a_g = jnp.zeros((NB, th, fout), jnp.float32)
    else:
        mem_g, a_g = state

    spike_g, mem_new, a_new = pl.pallas_call(
        _lsnn_kernel,
        out_shape=[jax.ShapeDtypeStruct((NB, th, fout), jnp.bfloat16),
                   jax.ShapeDtypeStruct((NB, th, fout), jnp.float32),
                   jax.ShapeDtypeStruct((NB, th, fout), jnp.float32)],
        grid_spec=pltpu.PrefetchScalarGridSpec(
            num_scalar_prefetch=0, grid=(NB,),
            in_specs=[in_band, in_w, in_vec, in_vec, io_state, io_state],
            out_specs=[io_state, io_state, io_state]),
        input_output_aliases={4: 1, 5: 2},     # mem / a updated in place
        compiler_params=cparams,
    )(xb, w_band, bias_row, alpha_row, mem_g, a_g)

    return to_nchw(spike_g, spike_dtype), (mem_new, a_new)


# -------------------------------- demo -------------------------------------- #

if __name__ == "__main__":
    B, Cin, Cout, H, W = 2, 4, 32, 16, 16

    key = jax.random.PRNGKey(0)
    ks = jax.random.split(key, 7)
    x = jax.random.normal(ks[0], (B, Cin, H, W), jnp.float32)
    w = 0.2 * jax.random.normal(ks[1], (Cout, Cin, 3, 3), jnp.float32)
    b = 0.1 * jax.random.normal(ks[2], (Cout,), jnp.float32)
    bn_gamma = 1.0 + 0.1 * jax.random.normal(ks[3], (Cout,), jnp.float32)
    bn_beta = 0.1 * jax.random.normal(ks[4], (Cout,), jnp.float32)
    bn_mean = 0.05 * jax.random.normal(ks[5], (Cout,), jnp.float32)
    bn_var = jnp.abs(1.0 + 0.1 * jax.random.normal(ks[6], (Cout,), jnp.float32))
    rho = 0.87 * jnp.ones((Cout, 1, 1), jnp.float32)     # nn.Parameter init

    # fuse BN + build banded conv weight ONCE (not per timestep)
    w_band, bias_row, alpha_row = prepare_params(
        w, b, bn_gamma, bn_beta, bn_mean, bn_var, rho, W=W)

    step = jax.jit(snn_2d_lsnn_step,
                   static_argnames=("mixed_at_mem", "is_first", "spike_dtype"))

    # param = {'mixed_at_mem': True}
    mem_this_p = step(x, w_band, bias_row, alpha_row,
                      mixed_at_mem=True, is_first=True)
    # timestep 1: param = {'mixed_at_mem': False, 'is_first': True}
    spike1, st1 = step(x, w_band, bias_row, alpha_row,
                       mixed_at_mem=False, is_first=True)
    # timestep 2: recurrent state carried in the kernel's internal layout
    spike2, st2 = step(x, w_band, bias_row, alpha_row, st1,
                       mixed_at_mem=False, is_first=False)
    jax.block_until_ready((mem_this_p, spike1, st1, spike2, st2))

    mem1, a1 = state_to_nchw(st1, B, H, W, Cout)
    mem2, a2 = state_to_nchw(st2, B, H, W, Cout)

    # ---- pure-JAX reference (same bf16 conv operands, f32 accumulation) ----
    eps = 1e-5
    scale = bn_gamma / jnp.sqrt(bn_var + eps)
    w_f = (w * scale[:, None, None, None]).astype(jnp.bfloat16)
    b_f = (b - bn_mean) * scale + bn_beta
    conv = lax.conv_general_dilated(
        x.astype(jnp.bfloat16), w_f, window_strides=(1, 1),
        padding=((1, 1), (1, 1)),
        dimension_numbers=("NCHW", "OIHW", "NCHW"),
        preferred_element_type=jnp.float32)
    mem_this_ref = conv + b_f[None, :, None, None]

    rho_clip = jnp.clip(rho, 0.64, 1.1)
    alpha_ref = jnp.exp(-1.0 / rho_clip)[None]            # (1, Cout, 1, 1)

    def ref_step(mem_prev, a_prev):
        A = THRESH + BETA * a_prev
        m = mem_prev + mem_this_ref
        s = (m > A).astype(jnp.float32)
        return s, m * DECAY * (1.0 - s), alpha_ref * a_prev + s, m, A

    def close(u, v, tol=2e-3):
        return bool(jnp.all(jnp.abs(u - v) <= tol * (1.0 + jnp.abs(v))))

    # conv + fused BN
    assert close(mem_this_p, mem_this_ref)

    # timestep 1 (zero state); spikes may flip only within the bf16 tolerance
    z = jnp.zeros_like(mem_this_ref)
    s_r, m_r, a_r, m_pre, A_r = ref_step(z, z)
    near = jnp.abs(m_pre - A_r) < 2e-3
    sp1 = spike1.astype(jnp.float32)
    assert bool(jnp.all((sp1 == s_r) | near))
    agree = sp1 == s_r
    assert close(jnp.where(agree, mem1, 0.0), jnp.where(agree, m_r, 0.0))
    assert close(jnp.where(agree, a1, 0.0), jnp.where(agree, a_r, 0.0))

    # timestep 2 (decay/reset ordering + adaptation update with nonzero state)
    s_r2, m_r2, a_r2, m_pre2, A_r2 = ref_step(mem1, a1)
    near2 = jnp.abs(m_pre2 - A_r2) < 2e-3
    sp2 = spike2.astype(jnp.float32)
    assert bool(jnp.all((sp2 == s_r2) | near2))
    agree2 = sp2 == s_r2
    assert close(jnp.where(agree2, mem2, 0.0), jnp.where(agree2, m_r2, 0.0))
    assert close(jnp.where(agree2, a2, 0.0), jnp.where(agree2, a_r2, 0.0))

    print("KERNEL_OK")
</pallas_src>

<mosaic_0001>
module attributes {stable_mosaic.version = 11 : i64} {
  func.func @_conv_bn_kernel(%arg0: i32, %arg1: memref<1x10x72xbf16, #tpu.memory_space<vmem>>, %arg2: memref<3x72x512xbf16, #tpu.memory_space<vmem>>, %arg3: memref<1x512xf32, #tpu.memory_space<vmem>>, %arg4: memref<1x8x512xf32, #tpu.memory_space<vmem>>) attributes {dimension_semantics = [#tpu.dimension_semantics<parallel>], iteration_bounds = array<i64: 4>, scalar_prefetch = 0 : i64, scratch_operands = 0 : i64, tpu.core_type = #tpu.core_type<tc>, window_params = [{transform_indices = @transform_0, window_bounds = array<i64: 1, 10, 72>}, {pipeline_mode = #tpu.pipeline_mode<synchronous>, transform_indices = @transform_1, window_bounds = array<i64: 3, 72, 512>}, {pipeline_mode = #tpu.pipeline_mode<synchronous>, transform_indices = @transform_2, window_bounds = array<i64: 1, 512>}, {transform_indices = @transform_3, window_bounds = array<i64: 1, 8, 512>}]} {
    %c0 = arith.constant 0 : index
    %c0_0 = arith.constant 0 : index
    %c0_1 = arith.constant 0 : index
    %0 = vector.load %arg1[%c0, %c0_0, %c0_1] : memref<1x10x72xbf16, #tpu.memory_space<vmem>>, vector<1x10x72xbf16>
    %1 = vector.shape_cast %0 : vector<1x10x72xbf16> to vector<10x72xbf16>
    %2 = vector.extract_strided_slice %1 {offsets = [0, 0], sizes = [8, 72], strides = [1, 1]} : vector<10x72xbf16> to vector<8x72xbf16>
    %c0_2 = arith.constant 0 : index
    %c0_3 = arith.constant 0 : index
    %c0_4 = arith.constant 0 : index
    %3 = vector.load %arg2[%c0_2, %c0_3, %c0_4] : memref<3x72x512xbf16, #tpu.memory_space<vmem>>, vector<1x72x512xbf16>
    %4 = vector.shape_cast %3 : vector<1x72x512xbf16> to vector<72x512xbf16>
    %cst = arith.constant dense<0.000000e+00> : vector<8x512xf32>
    %5 = tpu.matmul %2, %4, %cst {dimension_numbers = #tpu.dot_dimension_numbers<[1], [0], [0], [1], [0, 0, 1, 1], [], []>} : vector<8x72xbf16>, vector<72x512xbf16>, vector<8x512xf32> -> vector<8x512xf32>
    %6 = vector.extract_strided_slice %1 {offsets = [1, 0], sizes = [8, 72], strides = [1, 1]} : vector<10x72xbf16> to vector<8x72xbf16>
    %c1 = arith.constant 1 : index
    %c0_5 = arith.constant 0 : index
    %c0_6 = arith.constant 0 : index
    %7 = vector.load %arg2[%c1, %c0_5, %c0_6] : memref<3x72x512xbf16, #tpu.memory_space<vmem>>, vector<1x72x512xbf16>
    %8 = vector.shape_cast %7 : vector<1x72x512xbf16> to vector<72x512xbf16>
    %cst_7 = arith.constant dense<0.000000e+00> : vector<8x512xf32>
    %9 = tpu.matmul %6, %8, %cst_7 {dimension_numbers = #tpu.dot_dimension_numbers<[1], [0], [0], [1], [0, 0, 1, 1], [], []>} : vector<8x72xbf16>, vector<72x512xbf16>, vector<8x512xf32> -> vector<8x512xf32>
    %10 = arith.addf %5, %9 : vector<8x512xf32>
    %11 = vector.extract_strided_slice %1 {offsets = [2, 0], sizes = [8, 72], strides = [1, 1]} : vector<10x72xbf16> to vector<8x72xbf16>
    %c2 = arith.constant 2 : index
    %c0_8 = arith.constant 0 : index
    %c0_9 = arith.constant 0 : index
    %12 = vector.load %arg2[%c2, %c0_8, %c0_9] : memref<3x72x512xbf16, #tpu.memory_space<vmem>>, vector<1x72x512xbf16>
    %13 = vector.shape_cast %12 : vector<1x72x512xbf16> to vector<72x512xbf16>
    %cst_10 = arith.constant dense<0.000000e+00> : vector<8x512xf32>
    %14 = tpu.matmul %11, %13, %cst_10 {dimension_numbers = #tpu.dot_dimension_numbers<[1], [0], [0], [1], [0, 0, 1, 1], [], []>} : vector<8x72xbf16>, vector<72x512xbf16>, vector<8x512xf32> -> vector<8x512xf32>
    %15 = arith.addf %10, %14 : vector<8x512xf32>
    %c0_11 = arith.constant 0 : index
    %c0_12 = arith.constant 0 : index
    %16 = vector.load %arg3[%c0_11, %c0_12] : memref<1x512xf32, #tpu.memory_space<vmem>>, vector<1x512xf32>
    %17 = vector.broadcast %16 : vector<1x512xf32> to vector<8x512xf32>
    %18 = arith.addf %15, %17 : vector<8x512xf32>
    %c0_13 = arith.constant 0 : index
    %c0_14 = arith.constant 0 : index
    %c0_15 = arith.constant 0 : index
    %19 = vector.load %arg4[%c0_13, %c0_14, %c0_15] : memref<1x8x512xf32, #tpu.memory_space<vmem>>, vector<1x8x512xf32>
    %20 = vector.shape_cast %19 : vector<1x8x512xf32> to vector<8x512xf32>
    %21 = vector.shape_cast %18 : vector<8x512xf32> to vector<1x8x512xf32>
    tpu.vector_store %arg4[%c0_13, %c0_14, %c0_15], %21 {strides = array<i32>} : memref<1x8x512xf32, #tpu.memory_space<vmem>>, vector<1x8x512xf32>,
    return
  }
  func.func @transform_0(%arg0: i32) -> (i32, i32, i32) {
    %c0_i32 = arith.constant 0 : i32
    %c0_i32_0 = arith.constant 0 : i32
    %c0_i32_1 = arith.constant 0 : i32
    return %arg0, %c0_i32, %c0_i32_0 : i32, i32, i32
  }
  func.func @transform_1(%arg0: i32) -> (i32, i32, i32) {
    %c0_i32 = arith.constant 0 : i32
    %c0_i32_0 = arith.constant 0 : i32
    %c0_i32_1 = arith.constant 0 : i32
    %c0_i32_2 = arith.constant 0 : i32
    return %c0_i32, %c0_i32_0, %c0_i32_1 : i32, i32, i32
  }
  func.func @transform_2(%arg0: i32) -> (i32, i32) {
    %c0_i32 = arith.constant 0 : i32
    %c0_i32_0 = arith.constant 0 : i32
    %c0_i32_1 = arith.constant 0 : i32
    return %c0_i32, %c0_i32_0 : i32, i32
  }
  func.func @transform_3(%arg0: i32) -> (i32, i32, i32) {
    %c0_i32 = arith.constant 0 : i32
    %c0_i32_0 = arith.constant 0 : i32
    %c0_i32_1 = arith.constant 0 : i32
    return %arg0, %c0_i32, %c0_i32_0 : i32, i32, i32
  }
}

</mosaic_0001>

<llo_original>
// kernel: snn_2d_lsnn_step.1
$region0: #{snn_2d_lsnn_step.1}
  #allocation0 [shape = 'u32[]', space=smem, size = 0x4, offset = 0x4, fixed_abs, tag = 'smem constant byte address 0x4 - core index']
  #allocation1 [shape = 'u32[144,128]{1,0:T(1,128)}', space=vmem, size = 0x12000, scoped, tag = 'internal scratch']
  %s0 = inlined_call_operand.vmem [shape: bf16[4,10,72], index: 0, kind: input, shape index: {}]
  %s1 = inlined_call_operand.vmem [shape: bf16[3,72,512], index: 1, kind: input, shape index: {}]
  %s2 = inlined_call_operand.vmem [shape: f32[1,512], index: 2, kind: input, shape index: {}]
  %s3 = inlined_call_operand.vmem [shape: f32[4,8,512], index: 3, kind: output, shape index: {}]
  %s4 = sld [smem:[#allocation0]]
  $region45: #{snn_2d_lsnn_step.1} parent=0
    _
  %s6 = ssub.s32 1, %s4
  %s7 = scalar_select 0, %s6, %s4
  loop: start=0, step=1, limit=6
  $region2: #{snn_2d_lsnn_step.1} parent=0 // loop_pre_header
    _
  $region3: #{snn_2d_lsnn_step.1} parent=0 // loop_header
    %s9 = sphi 0, %s13
    %p10 = scmp.ge.s32.totalorder %s9, 6
    %s19 = sphi 0, %s21
    %s22 = sphi 0, %s19
    %s23 = sphi 0, %s22
    %s39 = sphi 0, %s23
    %s43 = sphi 0, %s43
    %s45 = sphi 0, %s43
    %s46 = sphi 0, %s45
    %s60 = sphi 0, %s46
    %s64 = sphi 0, %s64
    %s66 = sphi 0, %s64
    %s67 = sphi 0, %s66
    %s81 = sphi 0, %s67
    %s87 = sphi 0, %s89
    %s90 = sphi 0, %s87
    %s91 = sphi 0, %s90
    %s107 = sphi 0, %s91
  $region4: #{snn_2d_lsnn_step.1} parent=0 // loop_header_branch
    %12 = sbr.rel (%p10) target = $region8
  $region5: #{snn_2d_lsnn_step.1} parent=0 // loop_body
    %s14 = ssub.s32 %s9, 1
    %s15 = ssub.s32 %s9, 2
    %s16 = sadd.s32 %s9, 1
    %s17 = ssub.s32 %s9, %s16
    %p18 = scmp.eq.s32.totalorder %s17, 0
    %s20 = sadd.s32 %s19, 1
    %s21 = scalar_select %p18, %s19, %s20
    %p24 = pneg %p18
    %p25 = scmp.eq.s32.totalorder %s9, 3
    %p26 = por %p24, %p25
    %p27 = scmp.ne.s32.totalorder %s19, %s22
    %p28 = scmp.eq.s32.totalorder %s9, 0
    %p29 = por %p27, %p28
    %p30 = scmp.ne.s32.totalorder %s19, %s22
    %p31 = scmp.eq.s32.totalorder %s14, 3
    %p32 = por %p30, %p31
    %p33 = scmp.ne.s32.totalorder %s22, %s23
    %p34 = scmp.eq.s32.totalorder %s14, 0
    %p35 = por %p33, %p34
    %p36 = scmp.ne.s32.totalorder %s22, %s23
    %p37 = scmp.eq.s32.totalorder %s15, 3
    %p38 = por %p36, %p37
    %p40 = scmp.ne.s32.totalorder %s23, %s39
    %p41 = scmp.eq.s32.totalorder %s15, 0
    %p42 = por %p40, %p41
    %s44 = sadd.s32 %s43, 1
    %p47 = scmp.eq.s32.totalorder %s9, 3
    %p48 = scmp.ne.s32.totalorder %s43, %s45
    %p49 = scmp.eq.s32.totalorder %s9, 0
    %p50 = por %p48, %p49
    %p51 = scmp.ne.s32.totalorder %s43, %s45
    %p52 = scmp.eq.s32.totalorder %s14, 3
    %p53 = por %p51, %p52
    %p54 = scmp.ne.s32.totalorder %s45, %s46
    %p55 = scmp.eq.s32.totalorder %s14, 0
    %p56 = por %p54, %p55
    %p57 = scmp.ne.s32.totalorder %s45, %s46
    %p58 = scmp.eq.s32.totalorder %s15, 3
    %p59 = por %p57, %p58
    %p61 = scmp.ne.s32.totalorder %s46, %s60
    %p62 = scmp.eq.s32.totalorder %s15, 0
    %p63 = por %p61, %p62
    %s65 = sadd.s32 %s64, 1
    %p68 = scmp.eq.s32.totalorder %s9, 3
    %p69 = scmp.ne.s32.totalorder %s64, %s66
    %p70 = scmp.eq.s32.totalorder %s9, 0
    %p71 = por %p69, %p70
    %p72 = scmp.ne.s32.totalorder %s64, %s66
    %p73 = scmp.eq.s32.totalorder %s14, 3
    %p74 = por %p72, %p73
    %p75 = scmp.ne.s32.totalorder %s66, %s67
    %p76 = scmp.eq.s32.totalorder %s14, 0
    %p77 = por %p75, %p76
    %p78 = scmp.ne.s32.totalorder %s66, %s67
    %p79 = scmp.eq.s32.totalorder %s15, 3
    %p80 = por %p78, %p79
    %p82 = scmp.ne.s32.totalorder %s67, %s81
    %p83 = scmp.eq.s32.totalorder %s15, 0
    %p84 = por %p82, %p83
    %s85 = ssub.s32 %s9, %s16
    %p86 = scmp.eq.s32.totalorder %s85, 0
    %s88 = sadd.s32 %s87, 1
    %s89 = scalar_select %p86, %s87, %s88
    %p92 = pneg %p86
    %p93 = scmp.eq.s32.totalorder %s9, 3
    %p94 = por %p92, %p93
    %p95 = scmp.ne.s32.totalorder %s87, %s90
    %p96 = scmp.eq.s32.totalorder %s9, 0
    %p97 = por %p95, %p96
    %p98 = scmp.ne.s32.totalorder %s87, %s90
    %p99 = scmp.eq.s32.totalorder %s14, 3
    %p100 = por %p98, %p99
    %p101 = scmp.ne.s32.totalorder %s90, %s91
    %p102 = scmp.eq.s32.totalorder %s14, 0
    %p103 = por %p101, %p102
    %p104 = scmp.ne.s32.totalorder %s90, %s91
    %p105 = scmp.eq.s32.totalorder %s15, 3
    %p106 = por %p104, %p105
    %p108 = scmp.ne.s32.totalorder %s91, %s107
    %p109 = scmp.eq.s32.totalorder %s15, 0
    %p110 = por %p108, %p109
    %p111 = scmp.le.s32.totalorder 1, %s9
    %p112 = scmp.lt.s32.totalorder %s9, 5
    %p113 = pnand %p111, %p112
    %p114 = pneg %p113
    // Predicated region
    $region9: #{snn_2d_lsnn_step.1} parent=5 // pred_check
      _
    $region10: #{snn_2d_lsnn_step.1} parent=5 // pred_check_branch
      %116 = sbr.rel (%p113) target = $region12
    $region11: #{snn_2d_lsnn_step.1} parent=5 // pred_region
      %s117 = ssub.s32 %s9, 1
      // Predicated region
      $region13: #{snn_2d_lsnn_step.1} parent=11 // pred_check
        %p118 = pneg %p56
      $region14: #{snn_2d_lsnn_step.1} parent=11 // pred_check_branch
        %120 = sbr.rel (%p118) target = $region16
      $region15: #{snn_2d_lsnn_step.1} parent=11 // pred_region
        _
      $region16: #{snn_2d_lsnn_step.1} parent=11 // pred_fallthru
        _
      // Predicated region
      $region17: #{snn_2d_lsnn_step.1} parent=11 // pred_check
        %p121 = pneg %p77
      $region18: #{snn_2d_lsnn_step.1} parent=11 // pred_check_branch
        %123 = sbr.rel (%p121) target = $region20
      $region19: #{snn_2d_lsnn_step.1} parent=11 // pred_region
        _
      $region20: #{snn_2d_lsnn_step.1} parent=11 // pred_fallthru
        _
    $region12: #{snn_2d_lsnn_step.1} parent=5 // pred_fallthru
      _
    %p124 = scmp.lt.s32.totalorder %s9, 4
    // Predicated region
    $region21: #{snn_2d_lsnn_step.1} parent=5 // pred_check
      %p125 = pneg %p124
    $region22: #{snn_2d_lsnn_step.1} parent=5 // pred_check_branch
      %127 = sbr.rel (%p125) target = $region24
    $region23: #{snn_2d_lsnn_step.1} parent=5 // pred_region
      // Predicated region
      $region25: #{snn_2d_lsnn_step.1} parent=23 // pred_check
        %p128 = pneg %p29
      $region26: #{snn_2d_lsnn_step.1} parent=23 // pred_check_branch
        %130 = sbr.rel (%p128) target = $region28
      $region27: #{snn_2d_lsnn_step.1} parent=23 // pred_region
        %p131 = scmp.lt.s32.totalorder %s9, 3
        %s132 = scalar_select %p131, %s9, 3
        %s133 = smul.addr %s132, 2
        %s134 = smul.addr %s133, 4
        %s135 = scalar_lea.vmem %s0, %s134
      $region28: #{snn_2d_lsnn_step.1} parent=23 // pred_fallthru
        _
    $region24: #{snn_2d_lsnn_step.1} parent=5 // pred_fallthru
      _
    %p136 = scmp.le.s32.totalorder 1, %s9
    %p137 = scmp.lt.s32.totalorder %s9, 5
    %p138 = pnand %p136, %p137
    %p139 = pneg %p138
    // Predicated region
    $region29: #{snn_2d_lsnn_step.1} parent=5 // pred_check
      _
    $region30: #{snn_2d_lsnn_step.1} parent=5 // pred_check_branch
      %141 = sbr.rel (%p138) target = $region32
    $region31: #{snn_2d_lsnn_step.1} parent=5 // pred_region
      %s142 = ssub.s32 %s9, 1
      %p143 = scmp.lt.s32.totalorder %s14, 3
      %s144 = scalar_select %p143, %s14, 3
      %s145 = smul.addr %s144, 2
      %s146 = smul.addr %s145, 4
      %s147 = scalar_lea.vmem %s0, %s146
      %p148 = pneg %p35
      %p149 = pneg %p32
      %p150 = pneg %p56
      %p151 = pneg %p53
      %p152 = pneg %p77
      %p153 = pneg %p74
      %p154 = pneg %p103
      %p155 = pneg %p100
      %p156 = scmp.lt.s32.totalorder %s14, 3
      %s157 = scalar_select %p156, %s14, 3
      %s158 = smul.addr %s157, 4
      %s159 = smul.addr %s158, 8
      %s160 = scalar_lea.vmem %s3, %s159
      %p161 = scmp.lt.s32.totalorder %s14, 3
      %s162 = scalar_select %p161, %s14, 3
      %s163 = smul.addr %s162, 2
      %s164 = smul.addr %s163, 4
      %s165 = scalar_lea.vmem %s0, %s164
      %p166 = scmp.lt.s32.totalorder %s14, 3
      %s167 = scalar_select %p166, %s14, 3
      %s168 = smul.addr %s167, 4
      %s169 = smul.addr %s168, 8
      %s170 = scalar_lea.vmem %s3, %s169
      %v172 = vld [vmem:[%s165] sm:$0xf]
      %v173 = vld [vmem:[%s165 + $0x4] sm:$0x1]
      %v174 = vld [vmem:[%s1] sm:$0xff]
      %v175 = vld [vmem:[%s1 + $0x8] sm:$0xff]
      %v176 = vld [vmem:[%s1 + $0x10] sm:$0xff]
      %v177 = vld [vmem:[%s1 + $0x18] sm:$0xff]
      %v178 = vld [vmem:[%s1 + $0x20] sm:$0xff]
      %v179 = vld [vmem:[%s1 + $0x28] sm:$0xff]
      %v180 = vld [vmem:[%s1 + $0x30] sm:$0xff]
      %v181 = vld [vmem:[%s1 + $0x38] sm:$0xff]
      %v182 = vld [vmem:[%s1 + $0x40] sm:$0xff]
      %v183 = vld [vmem:[%s1 + $0x48] sm:$0xff]
      %v184 = vld [vmem:[%s1 + $0x50] sm:$0xff]
      %v185 = vld [vmem:[%s1 + $0x58] sm:$0xff]
      %v186 = vld [vmem:[%s1 + $0x60] sm:$0xff]
      %v187 = vld [vmem:[%s1 + $0x68] sm:$0xff]
      %v188 = vld [vmem:[%s1 + $0x70] sm:$0xff]
      %v189 = vld [vmem:[%s1 + $0x78] sm:$0xff]
      %v190 = vld [vmem:[%s1 + $0x80] sm:$0xff]
      %v191 = vld [vmem:[%s1 + $0x88] sm:$0xff]
      %s192 = scalar_lea.vmem %s1, 144
      %v193 = vld [vmem:[%s192] sm:$0xff]
      %v194 = vld [vmem:[%s192 + $0x8] sm:$0xff]
      %v195 = vld [vmem:[%s192 + $0x10] sm:$0xff]
      %v196 = vld [vmem:[%s192 + $0x18] sm:$0xff]
      %v197 = vld [vmem:[%s192 + $0x20] sm:$0xff]
      %v198 = vld [vmem:[%s192 + $0x28] sm:$0xff]
      %v199 = vld [vmem:[%s192 + $0x30] sm:$0xff]
      %v200 = vld [vmem:[%s192 + $0x38] sm:$0xff]
      %v201 = vld [vmem:[%s192 + $0x40] sm:$0xff]
      %v202 = vld [vmem:[%s192 + $0x48] sm:$0xff]
      %v203 = vld [vmem:[%s192 + $0x50] sm:$0xff]
      %v204 = vld [vmem:[%s192 + $0x58] sm:$0xff]
      %v205 = vld [vmem:[%s192 + $0x60] sm:$0xff]
      %v206 = vld [vmem:[%s192 + $0x68] sm:$0xff]
      %v207 = vld [vmem:[%s192 + $0x70] sm:$0xff]
      %v208 = vld [vmem:[%s192 + $0x78] sm:$0xff]
      %v209 = vld [vmem:[%s192 + $0x80] sm:$0xff]
      %v210 = vld [vmem:[%s192 + $0x88] sm:$0xff]
      %v213 = vunpack.c.l.b16 %v172
      %v214 = vunpack.c.l.b16 %v173
      %v215 = vpack.c.b16 %v214, %v213
      %v217 = vshrl.u32 %v215, 16
      %v219 = vshll.u32 %v215, 16
      %v221 = vrot.slane %v219, 1
      %v222 = vor.u32 %v217, %v221
      %v241 = vunpack.c.l.b16 %v193
      %v242 = vunpack.c.h.b16 %v193
      %v243 = vunpack.c.l.b16 %v194
      %v244 = vunpack.c.h.b16 %v194
      %v245 = vunpack.c.l.b16 %v195
      %v246 = vunpack.c.h.b16 %v195
      %v247 = vunpack.c.l.b16 %v196
      %v248 = vunpack.c.h.b16 %v196
      %v249 = vunpack.c.l.b16 %v197
      %v250 = vunpack.c.h.b16 %v197
      %v251 = vunpack.c.l.b16 %v198
      %v252 = vunpack.c.h.b16 %v198
      %v253 = vunpack.c.l.b16 %v199
      %v254 = vunpack.c.h.b16 %v199
      %v255 = vunpack.c.l.b16 %v200
      %v256 = vunpack.c.h.b16 %v200
      %v257 = vunpack.c.l.b16 %v201
      %v258 = vunpack.c.h.b16 %v201
      %v259 = vunpack.c.l.b16 %v202
      %v260 = vunpack.c.h.b16 %v202
      %v261 = vunpack.c.l.b16 %v203
      %v262 = vunpack.c.h.b16 %v203
      %v263 = vunpack.c.l.b16 %v204
      %v264 = vunpack.c.h.b16 %v204
      %v265 = vunpack.c.l.b16 %v205
      %v266 = vunpack.c.h.b16 %v205
      %v267 = vunpack.c.l.b16 %v206
      %v268 = vunpack.c.h.b16 %v206
      %v269 = vunpack.c.l.b16 %v207
      %v270 = vunpack.c.h.b16 %v207
      %v271 = vunpack.c.l.b16 %v208
      %v272 = vunpack.c.h.b16 %v208
      %v273 = vunpack.c.l.b16 %v209
      %v274 = vunpack.c.h.b16 %v209
      %v275 = vunpack.c.l.b16 %v210
      %v276 = vunpack.c.h.b16 %v210
      %v277 = vpack.c.b16 %v245, %v241
      %v278 = vpack.c.b16 %v246, %v242
      %v279 = vpack.c.b16 %v247, %v243
      %v280 = vpack.c.b16 %v248, %v244
      %v281 = vpack.c.b16 %v253, %v249
      %v282 = vpack.c.b16 %v254, %v250
      %v283 = vpack.c.b16 %v255, %v251
      %v284 = vpack.c.b16 %v256, %v252
      %v285 = vpack.c.b16 %v261, %v257
      %v286 = vpack.c.b16 %v262, %v258
      %v287 = vpack.c.b16 %v263, %v259
      %v288 = vpack.c.b16 %v264, %v260
      %v289 = vpack.c.b16 %v269, %v265
      %v290 = vpack.c.b16 %v270, %v266
      %v291 = vpack.c.b16 %v271, %v267
      %v292 = vpack.c.b16 %v272, %v268
      %v293 = vpack.c.b16 %v273, %v273
      %v294 = vpack.c.b16 %v274, %v274
      %v295 = vpack.c.b16 %v275, %v275
      %v296 = vpack.c.b16 %v276, %v276
      %vm313 = vcmask 588800
      %v315 = vsel %vm313, %v222, 0
      %vm317 = vcmask 1043456
      %v319 = vsel %vm317, %v293, 0
      %v322 = vsel %vm317, %v294, 0
      %v325 = vsel %vm317, %v295, 0
      %v328 = vsel %vm317, %v296, 0
      %330 = vmatprep.subr.bf16.mxu0 %v278
      %331 = vmatpush1.bf16.msra.mxu0 %v277
      %332 = vmatprep.subr.bf16.mxu0 %v282
      %333 = vmatpush1.bf16.msra.mxu0 %v281
      %334 = vmatprep.subr.bf16.mxu0 %v286
      %335 = vmatpush1.bf16.msra.mxu0 %v285
      %336 = vmatprep.subr.bf16.mxu0 %v290
      %337 = vmatpush1.bf16.msra.mxu0 %v289
      %338 = vmatprep.subr.bf16.mxu0 %v322
      %339 = vmatpush1.bf16.msra.mxu0 %v319
      %340 = vmatprep.subr.bf16.mxu0 0
      %341 = vmatpush1.bf16.msra.mxu0 0
      %342 = vmatprep.subr.bf16.mxu0 0
      %343 = vmatpush1.bf16.msra.mxu0 0
      %344 = vmatprep.subr.bf16.mxu0 0
      %345 = vmatpush1.bf16.msra.mxu0 0
      %346 = vmatprep.subr.bf16.mxu0 0
      %347 = vmatpush1.bf16.msra.mxu0 0
      %348 = vmatprep.subr.bf16.mxu0 0
      %349 = vmatpush1.bf16.msra.mxu0 0
      %350 = vmatprep.subr.bf16.mxu0 0
      %351 = vmatpush1.bf16.msra.mxu0 0
      %352 = vmatprep.subr.bf16.mxu0 0
      %353 = vmatpush1.bf16.msra.mxu0 0
      %354 = vmatprep.subr.bf16.mxu0 0
      %355 = vmatpush1.bf16.msra.mxu0 0
      %356 = vmatprep.subr.bf16.mxu0 0
      %357 = vmatpush1.bf16.msra.mxu0 0
      %358 = vmatprep.subr.bf16.mxu0 0
      %359 = vmatpush1.bf16.msra.mxu0 0
      %360 = vmatprep.subr.bf16.mxu0 0
      %361 = vmatpush1.bf16.msra.mxu0 0
      %362 = vmatprep.mubr.bf16.mxu0 0
      %363 = vmatmul.mubr.bf16.gmra.mrb[0].mxu0 %v315
      %v364 = vpop.f32.mrb[0].mxu0
      %v365 = vadd.f32 0.0, %v364
      %v366 = vpop.f32.mrb[0].mxu0
      %v367 = vadd.f32 0.0, %v366
      %v368 = vpop.f32.mrb[0].mxu0
      %v369 = vpop.f32.mrb[0].mxu0
      %370 = vdwg.mxu0
      %371 = vmatprep.subr.bf16.mxu0 %v280
      %372 = vmatpush1.bf16.msra.mxu0 %v279
      %373 = vmatprep.subr.bf16.mxu0 %v284
      %374 = vmatpush1.bf16.msra.mxu0 %v283
      %375 = vmatprep.subr.bf16.mxu0 %v288
      %376 = vmatpush1.bf16.msra.mxu0 %v287
      %377 = vmatprep.subr.bf16.mxu0 %v292
      %378 = vmatpush1.bf16.msra.mxu0 %v291
      %379 = vmatprep.subr.bf16.mxu0 %v328
      %380 = vmatpush1.bf16.msra.mxu0 %v325
      %381 = vmatprep.subr.bf16.mxu0 0
      %382 = vmatpush1.bf16.msra.mxu0 0
      %383 = vmatprep.subr.bf16.mxu0 0
      %384 = vmatpush1.bf16.msra.mxu0 0
      %385 = vmatprep.subr.bf16.mxu0 0
      %386 = vmatpush1.bf16.msra.mxu0 0
      %387 = vmatprep.subr.bf16.mxu0 0
      %388 = vmatpush1.bf16.msra.mxu0 0
      %389 = vmatprep.subr.bf16.mxu0 0
      %390 = vmatpush1.bf16.msra.mxu0 0
      %391 = vmatprep.subr.bf16.mxu0 0
      %392 = vmatpush1.bf16.msra.mxu0 0
      %393 = vmatprep.subr.bf16.mxu0 0
      %394 = vmatpush1.bf16.msra.mxu0 0
      %395 = vmatprep.subr.bf16.mxu0 0
      %396 = vmatpush1.bf16.msra.mxu0 0
      %397 = vmatprep.subr.bf16.mxu0 0
      %398 = vmatpush1.bf16.msra.mxu0 0
      %399 = vmatprep.subr.bf16.mxu0 0
      %400 = vmatpush1.bf16.msra.mxu0 0
      %401 = vmatprep.subr.bf16.mxu0 0
      %402 = vmatpush1.bf16.msra.mxu0 0
      %403 = vmatprep.mubr.bf16.mxu0 0
      %404 = vmatmul.mubr.bf16.gmra.mrb[0].mxu0 %v315
      %v405 = vpop.f32.mrb[0].mxu0
      %v406 = vadd.f32 0.0, %v405
      %v407 = vpop.f32.mrb[0].mxu0
      %v408 = vadd.f32 0.0, %v407
      %v409 = vpop.f32.mrb[0].mxu0
      %v410 = vpop.f32.mrb[0].mxu0
      %411 = vdwg.mxu0
      %v430 = vunpack.c.l.b16 %v174
      %v431 = vunpack.c.h.b16 %v174
      %v432 = vunpack.c.l.b16 %v175
      %v433 = vunpack.c.h.b16 %v175
      %v434 = vunpack.c.l.b16 %v176
      %v435 = vunpack.c.h.b16 %v176
      %v436 = vunpack.c.l.b16 %v177
      %v437 = vunpack.c.h.b16 %v177
      %v438 = vunpack.c.l.b16 %v178
      %v439 = vunpack.c.h.b16 %v178
      %v440 = vunpack.c.l.b16 %v179
      %v441 = vunpack.c.h.b16 %v179
      %v442 = vunpack.c.l.b16 %v180
      %v443 = vunpack.c.h.b16 %v180
      %v444 = vunpack.c.l.b16 %v181
      %v445 = vunpack.c.h.b16 %v181
      %v446 = vunpack.c.l.b16 %v182
      %v447 = vunpack.c.h.b16 %v182
      %v448 = vunpack.c.l.b16 %v183
      %v449 = vunpack.c.h.b16 %v183
      %v450 = vunpack.c.l.b16 %v184
      %v451 = vunpack.c.h.b16 %v184
      %v452 = vunpack.c.l.b16 %v185
      %v453 = vunpack.c.h.b16 %v185
      %v454 = vunpack.c.l.b16 %v186
      %v455 = vunpack.c.h.b16 %v186
      %v456 = vunpack.c.l.b16 %v187
      %v457 = vunpack.c.h.b16 %v187
      %v458 = vunpack.c.l.b16 %v188
      %v459 = vunpack.c.h.b16 %v188
      %v460 = vunpack.c.l.b16 %v189
      %v461 = vunpack.c.h.b16 %v189
      %v462 = vunpack.c.l.b16 %v190
      %v463 = vunpack.c.h.b16 %v190
      %v464 = vunpack.c.l.b16 %v191
      %v465 = vunpack.c.h.b16 %v191
      %v466 = vpack.c.b16 %v434, %v430
      %v467 = vpack.c.b16 %v435, %v431
      %v468 = vpack.c.b16 %v436, %v432
      %v469 = vpack.c.b16 %v437, %v433
      %v470 = vpack.c.b16 %v442, %v438
      %v471 = vpack.c.b16 %v443, %v439
      %v472 = vpack.c.b16 %v444, %v440
      %v473 = vpack.c.b16 %v445, %v441
      %v474 = vpack.c.b16 %v450, %v446
      %v475 = vpack.c.b16 %v451, %v447
      %v476 = vpack.c.b16 %v452, %v448
      %v477 = vpack.c.b16 %v453, %v449
      %v478 = vpack.c.b16 %v458, %v454
      %v479 = vpack.c.b16 %v459, %v455
      %v480 = vpack.c.b16 %v460, %v456
      %v481 = vpack.c.b16 %v461, %v457
      %v482 = vpack.c.b16 %v462, %v462
      %v483 = vpack.c.b16 %v463, %v463
      %v484 = vpack.c.b16 %v464, %v464
      %v485 = vpack.c.b16 %v465, %v465
      %v503 = vsel %vm313, %v172, 0
      %v506 = vsel %vm317, %v482, 0
      %v509 = vsel %vm317, %v483, 0
      %v512 = vsel %vm317, %v484, 0
      %v515 = vsel %vm317, %v485, 0
      %517 = vmatprep.subr.bf16.mxu0 %v467
      %518 = vmatpush1.bf16.msra.mxu0 %v466
      %519 = vmatprep.subr.bf16.mxu0 %v471
      %520 = vmatpush1.bf16.msra.mxu0 %v470
      %521 = vmatprep.subr.bf16.mxu0 %v475
      %522 = vmatpush1.bf16.msra.mxu0 %v474
      %523 = vmatprep.subr.bf16.mxu0 %v479
      %524 = vmatpush1.bf16.msra.mxu0 %v478
      %525 = vmatprep.subr.bf16.mxu0 %v509
      %526 = vmatpush1.bf16.msra.mxu0 %v506
      %527 = vmatprep.subr.bf16.mxu0 0
      %528 = vmatpush1.bf16.msra.mxu0 0
      %529 = vmatprep.subr.bf16.mxu0 0
      %530 = vmatpush1.bf16.msra.mxu0 0
      %531 = vmatprep.subr.bf16.mxu0 0
      %532 = vmatpush1.bf16.msra.mxu0 0
      %533 = vmatprep.subr.bf16.mxu0 0
      %534 = vmatpush1.bf16.msra.mxu0 0
      %535 = vmatprep.subr.bf16.mxu0 0
      %536 = vmatpush1.bf16.msra.mxu0 0
      %537 = vmatprep.subr.bf16.mxu0 0
      %538 = vmatpush1.bf16.msra.mxu0 0
      %539 = vmatprep.subr.bf16.mxu0 0
      %540 = vmatpush1.bf16.msra.mxu0 0
      %541 = vmatprep.subr.bf16.mxu0 0
      %542 = vmatpush1.bf16.msra.mxu0 0
      %543 = vmatprep.subr.bf16.mxu0 0
      %544 = vmatpush1.bf16.msra.mxu0 0
      %545 = vmatprep.subr.bf16.mxu0 0
      %546 = vmatpush1.bf16.msra.mxu0 0
      %547 = vmatprep.subr.bf16.mxu0 0
      %548 = vmatpush1.bf16.msra.mxu0 0
      %549 = vmatprep.mubr.bf16.mxu0 0
      %550 = vmatmul.mubr.bf16.gmra.mrb[0].mxu0 %v503
      %v551 = vpop.f32.mrb[0].mxu0
      %v552 = vadd.f32 %v365, %v551
      %v553 = vpop.f32.mrb[0].mxu0
      %v554 = vadd.f32 %v367, %v553
      %v555 = vpop.f32.mrb[0].mxu0
      %v556 = vpop.f32.mrb[0].mxu0
      %557 = vdwg.mxu0
      %558 = vmatprep.subr.bf16.mxu0 %v469
      %559 = vmatpush1.bf16.msra.mxu0 %v468
      %560 = vmatprep.subr.bf16.mxu0 %v473
      %561 = vmatpush1.bf16.msra.mxu0 %v472
      %562 = vmatprep.subr.bf16.mxu0 %v477
      %563 = vmatpush1.bf16.msra.mxu0 %v476
      %564 = vmatprep.subr.bf16.mxu0 %v481
      %565 = vmatpush1.bf16.msra.mxu0 %v480
      %566 = vmatprep.subr.bf16.mxu0 %v515
      %567 = vmatpush1.bf16.msra.mxu0 %v512
      %568 = vmatprep.subr.bf16.mxu0 0
      %569 = vmatpush1.bf16.msra.mxu0 0
      %570 = vmatprep.subr.bf16.mxu0 0
      %571 = vmatpush1.bf16.msra.mxu0 0
      %572 = vmatprep.subr.bf16.mxu0 0
      %573 = vmatpush1.bf16.msra.mxu0 0
      %574 = vmatprep.subr.bf16.mxu0 0
      %575 = vmatpush1.bf16.msra.mxu0 0
      %576 = vmatprep.subr.bf16.mxu0 0
      %577 = vmatpush1.bf16.msra.mxu0 0
      %578 = vmatprep.subr.bf16.mxu0 0
      %579 = vmatpush1.bf16.msra.mxu0 0
      %580 = vmatprep.subr.bf16.mxu0 0
      %581 = vmatpush1.bf16.msra.mxu0 0
      %582 = vmatprep.subr.bf16.mxu0 0
      %583 = vmatpush1.bf16.msra.mxu0 0
      %584 = vmatprep.subr.bf16.mxu0 0
      %585 = vmatpush1.bf16.msra.mxu0 0
      %586 = vmatprep.subr.bf16.mxu0 0
      %587 = vmatpush1.bf16.msra.mxu0 0
      %588 = vmatprep.subr.bf16.mxu0 0
      %589 = vmatpush1.bf16.msra.mxu0 0
      %590 = vmatprep.mubr.bf16.mxu0 0
      %591 = vmatmul.mubr.bf16.gmra.mrb[0].mxu0 %v503
      %v592 = vpop.f32.mrb[0].mxu0
      %v593 = vadd.f32 %v406, %v592
      %v594 = vpop.f32.mrb[0].mxu0
      %v595 = vadd.f32 %v408, %v594
      %v596 = vpop.f32.mrb[0].mxu0
      %v597 = vpop.f32.mrb[0].mxu0
      %598 = vdwg.mxu0
      %s599 = scalar_lea.vmem %s1, 288
      %v600 = vld [vmem:[%s599] sm:$0xff]
      %v601 = vld [vmem:[%s599 + $0x8] sm:$0xff]
      %v602 = vld [vmem:[%s599 + $0x10] sm:$0xff]
      %v603 = vld [vmem:[%s599 + $0x18] sm:$0xff]
      %v604 = vld [vmem:[%s599 + $0x20] sm:$0xff]
      %v605 = vld [vmem:[%s599 + $0x28] sm:$0xff]
      %v606 = vld [vmem:[%s599 + $0x30] sm:$0xff]
      %v607 = vld [vmem:[%s599 + $0x38] sm:$0xff]
      %v608 = vld [vmem:[%s599 + $0x40] sm:$0xff]
      %v609 = vld [vmem:[%s599 + $0x48] sm:$0xff]
      %v610 = vld [vmem:[%s599 + $0x50] sm:$0xff]
      %v611 = vld [vmem:[%s599 + $0x58] sm:$0xff]
      %v612 = vld [vmem:[%s599 + $0x60] sm:$0xff]
      %v613 = vld [vmem:[%s599 + $0x68] sm:$0xff]
      %v614 = vld [vmem:[%s599 + $0x70] sm:$0xff]
      %v615 = vld [vmem:[%s599 + $0x78] sm:$0xff]
      %v616 = vld [vmem:[%s599 + $0x80] sm:$0xff]
      %v617 = vld [vmem:[%s599 + $0x88] sm:$0xff]
      %v618 = vrot.slane %v215, 1
      %v637 = vunpack.c.l.b16 %v600
      %v638 = vunpack.c.h.b16 %v600
      %v639 = vunpack.c.l.b16 %v601
      %v640 = vunpack.c.h.b16 %v601
      %v641 = vunpack.c.l.b16 %v602
      %v642 = vunpack.c.h.b16 %v602
      %v643 = vunpack.c.l.b16 %v603
      %v644 = vunpack.c.h.b16 %v603
      %v645 = vunpack.c.l.b16 %v604
      %v646 = vunpack.c.h.b16 %v604
      %v647 = vunpack.c.l.b16 %v605
      %v648 = vunpack.c.h.b16 %v605
      %v649 = vunpack.c.l.b16 %v606
      %v650 = vunpack.c.h.b16 %v606
      %v651 = vunpack.c.l.b16 %v607
      %v652 = vunpack.c.h.b16 %v607
      %v653 = vunpack.c.l.b16 %v608
      %v654 = vunpack.c.h.b16 %v608
      %v655 = vunpack.c.l.b16 %v609
      %v656 = vunpack.c.h.b16 %v609
      %v657 = vunpack.c.l.b16 %v610
      %v658 = vunpack.c.h.b16 %v610
      %v659 = vunpack.c.l.b16 %v611
      %v660 = vunpack.c.h.b16 %v611
      %v661 = vunpack.c.l.b16 %v612
      %v662 = vunpack.c.h.b16 %v612
      %v663 = vunpack.c.l.b16 %v613
      %v664 = vunpack.c.h.b16 %v613
      %v665 = vunpack.c.l.b16 %v614
      %v666 = vunpack.c.h.b16 %v614
      %v667 = vunpack.c.l.b16 %v615
      %v668 = vunpack.c.h.b16 %v615
      %v669 = vunpack.c.l.b16 %v616
      %v670 = vunpack.c.h.b16 %v616
      %v671 = vunpack.c.l.b16 %v617
      %v672 = vunpack.c.h.b16 %v617
      %v673 = vpack.c.b16 %v641, %v637
      %v674 = vpack.c.b16 %v642, %v638
      %v675 = vpack.c.b16 %v643, %v639
      %v676 = vpack.c.b16 %v644, %v640
      %v677 = vpack.c.b16 %v649, %v645
      %v678 = vpack.c.b16 %v650, %v646
      %v679 = vpack.c.b16 %v651, %v647
      %v680 = vpack.c.b16 %v652, %v648
      %v681 = vpack.c.b16 %v657, %v653
      %v682 = vpack.c.b16 %v658, %v654
      %v683 = vpack.c.b16 %v659, %v655
      %v684 = vpack.c.b16 %v660, %v656
      %v685 = vpack.c.b16 %v665, %v661
      %v686 = vpack.c.b16 %v666, %v662
      %v687 = vpack.c.b16 %v667, %v663
      %v688 = vpack.c.b16 %v668, %v664
      %v689 = vpack.c.b16 %v669, %v669
      %v690 = vpack.c.b16 %v670, %v670
      %v691 = vpack.c.b16 %v671, %v671
      %v692 = vpack.c.b16 %v672, %v672
      %v710 = vsel %vm313, %v618, 0
      %v713 = vsel %vm317, %v689, 0
      %v716 = vsel %vm317, %v690, 0
      %v719 = vsel %vm317, %v691, 0
      %v722 = vsel %vm317, %v692, 0
      %724 = vmatprep.subr.bf16.mxu0 %v674
      %725 = vmatpush1.bf16.msra.mxu0 %v673
      %726 = vmatprep.subr.bf16.mxu0 %v678
      %727 = vmatpush1.bf16.msra.mxu0 %v677
      %728 = vmatprep.subr.bf16.mxu0 %v682
      %729 = vmatpush1.bf16.msra.mxu0 %v681
      %730 = vmatprep.subr.bf16.mxu0 %v686
      %731 = vmatpush1.bf16.msra.mxu0 %v685
      %732 = vmatprep.subr.bf16.mxu0 %v716
      %733 = vmatpush1.bf16.msra.mxu0 %v713
      %734 = vmatprep.subr.bf16.mxu0 0
      %735 = vmatpush1.bf16.msra.mxu0 0
      %736 = vmatprep.subr.bf16.mxu0 0
      %737 = vmatpush1.bf16.msra.mxu0 0
      %738 = vmatprep.subr.bf16.mxu0 0
      %739 = vmatpush1.bf16.msra.mxu0 0
      %740 = vmatprep.subr.bf16.mxu0 0
      %741 = vmatpush1.bf16.msra.mxu0 0
      %742 = vmatprep.subr.bf16.mxu0 0
      %743 = vmatpush1.bf16.msra.mxu0 0
      %744 = vmatprep.subr.bf16.mxu0 0
      %745 = vmatpush1.bf16.msra.mxu0 0
      %746 = vmatprep.subr.bf16.mxu0 0
      %747 = vmatpush1.bf16.msra.mxu0 0
      %748 = vmatprep.subr.bf16.mxu0 0
      %749 = vmatpush1.bf16.msra.mxu0 0
      %750 = vmatprep.subr.bf16.mxu0 0
      %751 = vmatpush1.bf16.msra.mxu0 0
      %752 = vmatprep.subr.bf16.mxu0 0
      %753 = vmatpush1.bf16.msra.mxu0 0
      %754 = vmatprep.subr.bf16.mxu0 0
      %755 = vmatpush1.bf16.msra.mxu0 0
      %756 = vmatprep.mubr.bf16.mxu0 0
      %757 = vmatmul.mubr.bf16.gmra.mrb[0].mxu0 %v710
      %v758 = vpop.f32.mrb[0].mxu0
      %v759 = vadd.f32 0.0, %v758
      %v760 = vpop.f32.mrb[0].mxu0
      %v761 = vadd.f32 0.0, %v760
      %v762 = vpop.f32.mrb[0].mxu0
      %v763 = vpop.f32.mrb[0].mxu0
      %764 = vdwg.mxu0
      %765 = vmatprep.subr.bf16.mxu0 %v676
      %766 = vmatpush1.bf16.msra.mxu0 %v675
      %767 = vmatprep.subr.bf16.mxu0 %v680
      %768 = vmatpush1.bf16.msra.mxu0 %v679
      %769 = vmatprep.subr.bf16.mxu0 %v684
      %770 = vmatpush1.bf16.msra.mxu0 %v683
      %771 = vmatprep.subr.bf16.mxu0 %v688
      %772 = vmatpush1.bf16.msra.mxu0 %v687
      %773 = vmatprep.subr.bf16.mxu0 %v722
      %774 = vmatpush1.bf16.msra.mxu0 %v719
      %775 = vmatprep.subr.bf16.mxu0 0
      %776 = vmatpush1.bf16.msra.mxu0 0
      %777 = vmatprep.subr.bf16.mxu0 0
      %778 = vmatpush1.bf16.msra.mxu0 0
      %779 = vmatprep.subr.bf16.mxu0 0
      %780 = vmatpush1.bf16.msra.mxu0 0
      %781 = vmatprep.subr.bf16.mxu0 0
      %782 = vmatpush1.bf16.msra.mxu0 0
      %783 = vmatprep.subr.bf16.mxu0 0
      %784 = vmatpush1.bf16.msra.mxu0 0
      %785 = vmatprep.subr.bf16.mxu0 0
      %786 = vmatpush1.bf16.msra.mxu0 0
      %787 = vmatprep.subr.bf16.mxu0 0
      %788 = vmatpush1.bf16.msra.mxu0 0
      %789 = vmatprep.subr.bf16.mxu0 0
      %790 = vmatpush1.bf16.msra.mxu0 0
      %791 = vmatprep.subr.bf16.mxu0 0
      %792 = vmatpush1.bf16.msra.mxu0 0
      %793 = vmatprep.subr.bf16.mxu0 0
      %794 = vmatpush1.bf16.msra.mxu0 0
      %795 = vmatprep.subr.bf16.mxu0 0
      %796 = vmatpush1.bf16.msra.mxu0 0
      %797 = vmatprep.mubr.bf16.mxu0 0
      %798 = vmatmul.mubr.bf16.gmra.mrb[0].mxu0 %v710
      %v799 = vpop.f32.mrb[0].mxu0
      %v800 = vadd.f32 0.0, %v799
      %v801 = vpop.f32.mrb[0].mxu0
      %v802 = vadd.f32 0.0, %v801
      %v803 = vpop.f32.mrb[0].mxu0
      %v804 = vpop.f32.mrb[0].mxu0
      %805 = vdwg.mxu0
      %v806 = vadd.f32 %v552, %v759
      %v807 = vadd.f32 %v554, %v761
      %v808 = vadd.f32 %v593, %v800
      %v809 = vadd.f32 %v595, %v802
      %v810 = vld [vmem:[%s2] sm:$0xf]
      %v812 = vlaneseq
      %v813 = vshrl.u32 %v812, 7
      %v814 = vsub.s32 0, %v813
      %v815 = vrot.slane %v810, %v814
      %v816 = vlaneseq
      %v817 = vshrl.u32 %v816, 7
      %v818 = vsub.s32 1, %v817
      %v819 = vrot.slane %v810, %v818
      %v820 = vlaneseq
      %v821 = vshrl.u32 %v820, 7
      %v822 = vsub.s32 2, %v821
      %v823 = vrot.slane %v810, %v822
      %v824 = vlaneseq
      %v825 = vshrl.u32 %v824, 7
      %v826 = vsub.s32 3, %v825
      %v827 = vrot.slane %v810, %v826
      %v832 = vadd.f32 %v806, %v815
      %v833 = vadd.f32 %v807, %v819
      %v834 = vadd.f32 %v808, %v823
      %v835 = vadd.f32 %v809, %v827
      %836 = vst [vmem:[%s170] sm:$0xff] %v832
      %837 = vst [vmem:[%s170 + $0x8] sm:$0xff] %v833
      %838 = vst [vmem:[%s170 + $0x10] sm:$0xff] %v834
      %839 = vst [vmem:[%s170 + $0x18] sm:$0xff] %v835
      %p840 = scmp.lt.s32.totalorder %s14, 3
      %s841 = scalar_select %p840, %s14, 3
      %s842 = smul.addr %s841, 4
      %s843 = smul.addr %s842, 8
      %s844 = scalar_lea.vmem %s3, %s843
      // Predicated region
      $region33: #{snn_2d_lsnn_step.1} parent=31 // pred_check
        %p845 = pneg %p100
      $region34: #{snn_2d_lsnn_step.1} parent=31 // pred_check_branch
        %847 = sbr.rel (%p845) target = $region36
      $region35: #{snn_2d_lsnn_step.1} parent=31 // pred_region
        _
      $region36: #{snn_2d_lsnn_step.1} parent=31 // pred_fallthru
        _
    $region32: #{snn_2d_lsnn_step.1} parent=5 // pred_fallthru
      _
    %p848 = scmp.le.s32.totalorder 2, %s9
    // Predicated region
    $region37: #{snn_2d_lsnn_step.1} parent=5 // pred_check
      %p849 = pneg %p848
    $region38: #{snn_2d_lsnn_step.1} parent=5 // pred_check_branch
      %851 = sbr.rel (%p849) target = $region40
    $region39: #{snn_2d_lsnn_step.1} parent=5 // pred_region
      %s852 = ssub.s32 %s9, 2
      // Predicated region
      $region41: #{snn_2d_lsnn_step.1} parent=39 // pred_check
        %p853 = pneg %p106
      $region42: #{snn_2d_lsnn_step.1} parent=39 // pred_check_branch
        %855 = sbr.rel (%p853) target = $region44
      $region43: #{snn_2d_lsnn_step.1} parent=39 // pred_region
        %p856 = scmp.lt.s32.totalorder %s15, 3
        %s857 = scalar_select %p856, %s15, 3
        %s858 = smul.addr %s857, 4
        %s859 = smul.addr %s858, 8
        %s860 = scalar_lea.vmem %s3, %s859
      $region44: #{snn_2d_lsnn_step.1} parent=39 // pred_fallthru
        _
    $region40: #{snn_2d_lsnn_step.1} parent=5 // pred_fallthru
      _
  $region6: #{snn_2d_lsnn_step.1} parent=0 // loop_footer
    %s13 = sadd.s32 1, %s9
  $region7: #{snn_2d_lsnn_step.1} parent=0 // loop_footer_branch
    %8 = sbr.rel target = $region3
  $region8: #{snn_2d_lsnn_step.1} parent=0 // loop_exit
    _

</llo_original>
